<compile_context>
chip_gen: v7x
topology: tpu7x:2x2x1
jax: 0.10.0
libtpu: 0.0.40
codegen_flags: <defaults>
</compile_context>

<pallas_src>
import jax
import jax.numpy as jnp
from jax.experimental import pallas as pl
from jax.experimental.pallas import tpu as pltpu


# ---------------------------------------------------------------------------
# Kernel 1: multi-head attention + unify-heads + residual + LayerNorm1
# Grid: (batch_blocks [parallel], heads [arbitrary reduction])
# ---------------------------------------------------------------------------
def attention_ln1_kernel(
    x_ref,            # (bb, T, E) f32
    wqkv_ref,         # (1, E, 3E) bf16 -- head j: [wq * E**-0.5 | wk | wv]
    wu_ref,           # (1, E, E)  bf16 -- head j's unify-heads block
    bu_ref,           # (1, E) f32
    g1_ref, be1_ref,  # (1, E) f32 LayerNorm1 gamma / beta
    y_ref,            # (bb, T, E) out: LN1(attention(x) + x)
    acc_ref,          # VMEM (bb*T, E) f32 accumulator over heads
    xb_ref,           # VMEM (bb*T, E) bf16 cached flattened/cast input
):
    j = pl.program_id(1)                       # head index (reduction axis)
    bb, t, e = x_ref.shape
    m = bb * t
    eps = 1e-5

    @pl.when(j == 0)
    def _():
        acc_ref[...] = jnp.zeros_like(acc_ref)
        # Cache the flattened, bf16-cast activations once per batch block.
        xb_ref[...] = x_ref[...].reshape(m, e).astype(jnp.bfloat16)

    x2b = xb_ref[...]                                        # (m, E) bf16

    # Fused Q/K/V projection for this head (attention scale already folded
    # into the Q block of the packed weight at pack time).
    qkv = jnp.dot(x2b, wqkv_ref[0], preferred_element_type=jnp.float32)
    qkv = qkv.astype(jnp.bfloat16)
    q3 = qkv[:, :e].reshape(bb, t, e)
    k3 = qkv[:, e:2 * e].reshape(bb, t, e)
    v3 = qkv[:, 2 * e:].reshape(bb, t, e)

    # Per-batch scaled dot-product attention (mask=False, dropout=0).
    s = jnp.einsum("bqe,bke->bqk", q3, k3, preferred_element_type=jnp.float32)
    s = s - jnp.max(s, axis=-1, keepdims=True)
    p = jnp.exp(s)
    p = p * pl.reciprocal(jnp.sum(p, axis=-1, keepdims=True), approx=True)
    ctx = jnp.einsum("bqk,bke->bqe", p.astype(jnp.bfloat16), v3,
                     preferred_element_type=jnp.float32)

    # Partial unify-heads contribution for this head, accumulated in f32 VMEM.
    acc_ref[...] += jnp.dot(ctx.reshape(m, e).astype(jnp.bfloat16), wu_ref[0],
                            preferred_element_type=jnp.float32)

    # Last head: unify bias + residual + LayerNorm1 (all f32).
    @pl.when(j == pl.num_programs(1) - 1)
    def _():
        y = acc_ref[...] + bu_ref[0] + x_ref[...].reshape(m, e)
        mu = jnp.mean(y, axis=-1, keepdims=True)
        var = jnp.mean((y - mu) ** 2, axis=-1, keepdims=True)
        y = (y - mu) * jax.lax.rsqrt(var + eps) * g1_ref[0] + be1_ref[0]
        y_ref[...] = y.reshape(bb, t, e).astype(y_ref.dtype)


# ---------------------------------------------------------------------------
# Kernel 2: feed-forward (Linear -> ReLU -> Linear) + residual + LayerNorm2
# Grid: (row_blocks [parallel], F_chunks [arbitrary reduction])
# ReLU is elementwise along F, so it can be applied per F-chunk and the
# second matmul accumulated across chunks -- wf1/wf2 are streamed, never
# fully resident in VMEM.
# ---------------------------------------------------------------------------
def ff_ln2_kernel(
    y_ref,            # (rm, E) f32  LN1 output rows
    wf1_ref,          # (E, fc) bf16
    bf1_ref,          # (1, fc) f32
    wf2_ref,          # (fc, E) bf16
    bf2_ref,          # (1, E) f32
    g2_ref, be2_ref,  # (1, E) f32 LayerNorm2 gamma / beta
    o_ref,            # (rm, E) out
    acc_ref,          # VMEM (rm, E) f32
    yb_ref,           # VMEM (rm, E) bf16 cached cast input
):
    c = pl.program_id(1)                       # F-chunk index (reduction axis)
    eps = 1e-5

    @pl.when(c == 0)
    def _():
        acc_ref[...] = jnp.zeros_like(acc_ref)
        yb_ref[...] = y_ref[...].astype(jnp.bfloat16)

    hid = jnp.dot(yb_ref[...], wf1_ref[...], preferred_element_type=jnp.float32)
    hid = jnp.maximum(hid + bf1_ref[0], 0.0)
    acc_ref[...] += jnp.dot(hid.astype(jnp.bfloat16), wf2_ref[...],
                            preferred_element_type=jnp.float32)

    # Last chunk: second-layer bias + residual + LayerNorm2.
    @pl.when(c == pl.num_programs(1) - 1)
    def _():
        z = acc_ref[...] + bf2_ref[0] + y_ref[...]
        mu = jnp.mean(z, axis=-1, keepdims=True)
        var = jnp.mean((z - mu) ** 2, axis=-1, keepdims=True)
        z = (z - mu) * jax.lax.rsqrt(var + eps) * g2_ref[0] + be2_ref[0]
        o_ref[...] = z.astype(o_ref.dtype)


# ---------------------------------------------------------------------------
# Block-size heuristics
# ---------------------------------------------------------------------------
def _pick_batch_block(b, t, target_rows=256):
    """bb | b. Prefer >= 2 parallel programs (v7x: 2 TensorCores), then the
    smallest bb with bb*t >= target_rows (fills the 256-wide v6e/v7x MXU)."""
    divs = [d for d in range(1, b + 1) if b % d == 0]
    cands = [d for d in divs if b // d >= 2] or divs
    for d in cands:
        if d * t >= target_rows:
            return d, b // d
    d = cands[-1]
    return d, b // d


def _pick_row_block(rows, target_rows=256):
    """rm | rows. Prefer >= 2 parallel programs, then rm >= target_rows."""
    divs = [d for d in range(1, rows + 1) if rows % d == 0]
    cands = [d for d in divs if rows // d >= 2] or divs
    for d in cands:
        if d >= target_rows:
            return d, rows // d
    d = cands[-1]
    return d, rows // d


def _pick_f_chunk(f, target=512):
    """Largest multiple of 128 that divides f and is <= target, else f."""
    best = None
    for d in range(128, min(f, target) + 1, 128):
        if f % d == 0:
            best = d
    if best is None:
        best = f
    return best, f // best


def _const_spec(shape):
    """Grid-invariant block: single-buffered (no wasted second VMEM buffer)."""
    return pl.BlockSpec(shape, lambda i, j: (0, 0),
                        pipeline_mode=pl.Buffered(1))


# ---------------------------------------------------------------------------
# Wrapper
# ---------------------------------------------------------------------------
def transformer_block(x, kp, *, target_rows=256, head_buffering=2,
                      vmem_limit_bytes=None):
    """x: (B, T, E) f32. kp: packed kernel params (see pack_params).

    head_buffering: sweep 2 vs 3 on v6e/v7x if per-head weight DMA is exposed.
    vmem_limit_bytes: set explicitly on v5e if the scoped-VMEM default is hit.
    """
    b, t, e = x.shape
    h = kp["wqkv"].shape[0]
    f = kp["wf1"].shape[1]

    # ---- stage 1: multi-head attention + residual + LayerNorm1 ----
    bb, nb = _pick_batch_block(b, t, target_rows)
    m = bb * t

    head_kwargs = {}
    if head_buffering != 2:
        head_kwargs["pipeline_mode"] = pl.Buffered(head_buffering)

    attn_specs = [
        pl.BlockSpec((bb, t, e), lambda i, j: (i, 0, 0)),                     # x
        pl.BlockSpec((1, e, 3 * e), lambda i, j: (j, 0, 0), **head_kwargs),   # wqkv
        pl.BlockSpec((1, e, e), lambda i, j: (j, 0, 0), **head_kwargs),       # wu
        _const_spec(kp["bu"].shape),
        _const_spec(kp["g1"].shape),
        _const_spec(kp["be1"].shape),
    ]

    y = pl.pallas_call(
        attention_ln1_kernel,
        out_shape=jax.ShapeDtypeStruct((b, t, e), x.dtype),
        grid=(nb, h),
        in_specs=attn_specs,
        out_specs=pl.BlockSpec((bb, t, e), lambda i, j: (i, 0, 0)),
        scratch_shapes=[pltpu.VMEM((m, e), jnp.float32),
                        pltpu.VMEM((m, e), jnp.bfloat16)],
        compiler_params=pltpu.CompilerParams(
            dimension_semantics=("parallel", "arbitrary"),
            vmem_limit_bytes=vmem_limit_bytes),
    )(x, kp["wqkv"], kp["wu"], kp["bu"], kp["g1"], kp["be1"])

    # ---- stage 2: feed-forward + residual + LayerNorm2 ----
    rows = b * t
    y2 = y.reshape(rows, e)
    rm, nr = _pick_row_block(rows, target_rows)
    fc, nf = _pick_f_chunk(f)

    ff_specs = [
        pl.BlockSpec((rm, e), lambda i, c: (i, 0)),       # y rows (constant in c)
        pl.BlockSpec((e, fc), lambda i, c: (0, c)),       # wf1 F-chunk
        pl.BlockSpec((1, fc), lambda i, c: (0, c)),       # bf1 F-chunk
        pl.BlockSpec((fc, e), lambda i, c: (c, 0)),       # wf2 F-chunk
        _const_spec(kp["bf2"].shape),
        _const_spec(kp["g2"].shape),
        _const_spec(kp["be2"].shape),
    ]

    out2 = pl.pallas_call(
        ff_ln2_kernel,
        out_shape=jax.ShapeDtypeStruct((rows, e), x.dtype),
        grid=(nr, nf),
        in_specs=ff_specs,
        out_specs=pl.BlockSpec((rm, e), lambda i, c: (i, 0)),
        scratch_shapes=[pltpu.VMEM((rm, e), jnp.float32),
                        pltpu.VMEM((rm, e), jnp.bfloat16)],
        compiler_params=pltpu.CompilerParams(
            dimension_semantics=("parallel", "arbitrary"),
            vmem_limit_bytes=vmem_limit_bytes),
    )(y2, kp["wf1"], kp["bf1"], kp["wf2"], kp["bf2"], kp["g2"], kp["be2"])

    return out2.reshape(b, t, e)


# ---------------------------------------------------------------------------
# Parameters
# ---------------------------------------------------------------------------
def init_params(key, emb, heads, ff_hidden_mult=4):
    """Deterministic synthetic parameters in math-level (f32, per-head) layout.

    wq/wk/wv/wu are (H, E, E), with wq[j] the transpose of the j-th E-row
    block of the PyTorch nn.Linear weight, so x @ wq[j] gives head j's query."""
    ff = ff_hidden_mult * emb
    ks = jax.random.split(key, 8)
    s = 0.05
    return {
        "wq":  jax.random.normal(ks[0], (heads, emb, emb), jnp.float32) * s,
        "wk":  jax.random.normal(ks[1], (heads, emb, emb), jnp.float32) * s,
        "wv":  jax.random.normal(ks[2], (heads, emb, emb), jnp.float32) * s,
        "wu":  jax.random.normal(ks[3], (heads, emb, emb), jnp.float32) * s,
        "bu":  jax.random.normal(ks[4], (1, emb), jnp.float32) * s,
        "g1":  jnp.ones((1, emb), jnp.float32),
        "be1": jnp.zeros((1, emb), jnp.float32),
        "wf1": jax.random.normal(ks[5], (emb, ff), jnp.float32) * s,
        "bf1": jax.random.normal(ks[6], (1, ff), jnp.float32) * s,
        "wf2": jax.random.normal(ks[7], (ff, emb), jnp.float32) * s,
        "bf2": jnp.zeros((1, emb), jnp.float32),
        "g2":  jnp.ones((1, emb), jnp.float32),
        "be2": jnp.zeros((1, emb), jnp.float32),
    }


def pack_params(p):
    """One-time host-side packing into the kernel layout:
      * wq/wk/wv fused into (H, E, 3E) with the full 1/sqrt(E) attention
        scale folded into the Q block (removes the per-step VPU multiply),
      * all matmul weights stored as bf16 (MXU-native, halves weight DMA),
      * biases / LayerNorm params kept f32."""
    e = p["wq"].shape[1]
    scale = float(e) ** -0.5
    wqkv = jnp.concatenate([p["wq"] * scale, p["wk"], p["wv"]], axis=-1)
    return {
        "wqkv": wqkv.astype(jnp.bfloat16),
        "wu":   p["wu"].astype(jnp.bfloat16),
        "bu":   p["bu"],
        "g1":   p["g1"], "be1": p["be1"],
        "wf1":  p["wf1"].astype(jnp.bfloat16),
        "bf1":  p["bf1"],
        "wf2":  p["wf2"].astype(jnp.bfloat16),
        "bf2":  p["bf2"],
        "g2":   p["g2"], "be2": p["be2"],
    }


# ---------------------------------------------------------------------------
# Pure-JAX reference of the PyTorch forward (mask=False, dropout=0)
# ---------------------------------------------------------------------------
def reference_block(x, p):
    b, t, e = x.shape
    scale = 1.0 / (e ** 0.25)
    q = jnp.einsum("bte,hef->bhtf", x, p["wq"]) * scale
    k = jnp.einsum("bte,hef->bhtf", x, p["wk"]) * scale
    v = jnp.einsum("bte,hef->bhtf", x, p["wv"])
    dot = jax.nn.softmax(jnp.einsum("bhqe,bhke->bhqk", q, k), axis=-1)
    out = jnp.einsum("bhqk,bhke->bhqe", dot, v)
    attended = jnp.einsum("bhte,hef->btf", out, p["wu"]) + p["bu"][0]

    def ln(y, g, be):
        mu = jnp.mean(y, axis=-1, keepdims=True)
        var = jnp.mean((y - mu) ** 2, axis=-1, keepdims=True)
        return (y - mu) * jax.lax.rsqrt(var + 1e-5) * g[0] + be[0]

    y = ln(attended + x, p["g1"], p["be1"])
    ffo = jnp.maximum(y @ p["wf1"] + p["bf1"][0], 0.0) @ p["wf2"] + p["bf2"][0]
    return ln(ffo + y, p["g2"], p["be2"])


if __name__ == "__main__":
    B, T, E, H = 2, 8, 32, 4   # batch, seq_length, emb, heads
    key = jax.random.PRNGKey(0)
    kx, kw = jax.random.split(key)
    x = jax.random.normal(kx, (B, T, E), jnp.float32)
    params = init_params(kw, E, H)
    kparams = pack_params(params)          # one-time host-side packing / bf16 cast

    out = jax.block_until_ready(transformer_block(x, kparams))
    ref = reference_block(x, params)

    assert out.shape == (B, T, E)
    # Tolerance accounts for bf16 MXU inputs and the EUP approximate
    # reciprocal in the softmax denominator.
    err = float(jnp.max(jnp.abs(out - ref)))
    assert jnp.allclose(out, ref, rtol=3e-2, atol=3e-2), f"max abs err {err}"

    print("KERNEL_OK")
</pallas_src>

<mosaic_0001>
module attributes {stable_mosaic.version = 11 : i64} {
  func.func @attention_ln1_kernel(%arg0: i32, %arg1: i32, %arg2: memref<1x8x32xf32, #tpu.memory_space<vmem>>, %arg3: memref<1x32x96xbf16, #tpu.memory_space<vmem>>, %arg4: memref<1x32x32xbf16, #tpu.memory_space<vmem>>, %arg5: memref<1x32xf32, #tpu.memory_space<vmem>>, %arg6: memref<1x32xf32, #tpu.memory_space<vmem>>, %arg7: memref<1x32xf32, #tpu.memory_space<vmem>>, %arg8: memref<1x8x32xf32, #tpu.memory_space<vmem>>, %arg9: memref<8x32xf32, #tpu.memory_space<vmem>>, %arg10: memref<8x32xbf16, #tpu.memory_space<vmem>>) attributes {dimension_semantics = [#tpu.dimension_semantics<parallel>, #tpu.dimension_semantics<arbitrary>], iteration_bounds = array<i64: 2, 4>, scalar_prefetch = 0 : i64, scratch_operands = 2 : i64, tpu.core_type = #tpu.core_type<tc>, window_params = [{transform_indices = @transform_0, window_bounds = array<i64: 1, 8, 32>}, {transform_indices = @transform_1, window_bounds = array<i64: 1, 32, 96>}, {transform_indices = @transform_2, window_bounds = array<i64: 1, 32, 32>}, {pipeline_mode = #tpu.pipeline_mode<synchronous>, transform_indices = @transform_3, window_bounds = array<i64: 1, 32>}, {pipeline_mode = #tpu.pipeline_mode<synchronous>, transform_indices = @transform_4, window_bounds = array<i64: 1, 32>}, {pipeline_mode = #tpu.pipeline_mode<synchronous>, transform_indices = @transform_5, window_bounds = array<i64: 1, 32>}, {transform_indices = @transform_6, window_bounds = array<i64: 1, 8, 32>}]} {
    %c0_i32 = arith.constant 0 : i32
    %0 = arith.cmpi eq, %arg1, %c0_i32 : i32
    %1 = arith.extui %0 : i1 to i32
    %c0_i32_0 = arith.constant 0 : i32
    %2 = arith.cmpi ne, %1, %c0_i32_0 : i32
    scf.if %2 {
      %cst_18 = arith.constant 0.000000e+00 : f32
      %38 = vector.broadcast %cst_18 : f32 to vector<8x32xf32>
      %c0_19 = arith.constant 0 : index
      %c0_20 = arith.constant 0 : index
      %39 = vector.load %arg9[%c0_19, %c0_20] : memref<8x32xf32, #tpu.memory_space<vmem>>, vector<8x32xf32>
      tpu.vector_store %arg9[%c0_19, %c0_20], %38 {strides = array<i32>} : memref<8x32xf32, #tpu.memory_space<vmem>>, vector<8x32xf32>,
      %c0_21 = arith.constant 0 : index
      %c0_22 = arith.constant 0 : index
      %c0_23 = arith.constant 0 : index
      %40 = vector.load %arg2[%c0_21, %c0_22, %c0_23] : memref<1x8x32xf32, #tpu.memory_space<vmem>>, vector<1x8x32xf32>
      %41 = vector.shape_cast %40 : vector<1x8x32xf32> to vector<8x32xf32>
      %42 = arith.truncf %41 : vector<8x32xf32> to vector<8x32xbf16>
      %c0_24 = arith.constant 0 : index
      %c0_25 = arith.constant 0 : index
      %43 = vector.load %arg10[%c0_24, %c0_25] : memref<8x32xbf16, #tpu.memory_space<vmem>>, vector<8x32xbf16>
      tpu.vector_store %arg10[%c0_24, %c0_25], %42 {strides = array<i32>} : memref<8x32xbf16, #tpu.memory_space<vmem>>, vector<8x32xbf16>,
    } else {
    }
    %c0 = arith.constant 0 : index
    %c0_1 = arith.constant 0 : index
    %3 = vector.load %arg10[%c0, %c0_1] : memref<8x32xbf16, #tpu.memory_space<vmem>>, vector<8x32xbf16>
    %c0_2 = arith.constant 0 : index
    %c0_3 = arith.constant 0 : index
    %c0_4 = arith.constant 0 : index
    %4 = vector.load %arg3[%c0_2, %c0_3, %c0_4] : memref<1x32x96xbf16, #tpu.memory_space<vmem>>, vector<1x32x96xbf16>
    %5 = vector.shape_cast %4 : vector<1x32x96xbf16> to vector<32x96xbf16>
    %cst = arith.constant dense<0.000000e+00> : vector<8x96xf32>
    %6 = tpu.matmul %3, %5, %cst {dimension_numbers = #tpu.dot_dimension_numbers<[1], [0], [0], [1], [0, 0, 1, 1], [], []>} : vector<8x32xbf16>, vector<32x96xbf16>, vector<8x96xf32> -> vector<8x96xf32>
    %7 = arith.truncf %6 : vector<8x96xf32> to vector<8x96xbf16>
    %8 = vector.extract_strided_slice %7 {offsets = [0, 0], sizes = [8, 32], strides = [1, 1]} : vector<8x96xbf16> to vector<8x32xbf16>
    %9 = vector.shape_cast %8 : vector<8x32xbf16> to vector<1x8x32xbf16>
    %10 = vector.extract_strided_slice %7 {offsets = [0, 32], sizes = [8, 32], strides = [1, 1]} : vector<8x96xbf16> to vector<8x32xbf16>
    %11 = vector.shape_cast %10 : vector<8x32xbf16> to vector<1x8x32xbf16>
    %12 = vector.extract_strided_slice %7 {offsets = [0, 64], sizes = [8, 32], strides = [1, 1]} : vector<8x96xbf16> to vector<8x32xbf16>
    %13 = vector.shape_cast %12 : vector<8x32xbf16> to vector<1x8x32xbf16>
    "tpu.trace_start"() <{level = 10 : i32, message = "bqe,bke->bqk"}> : () -> ()
    %cst_5 = arith.constant dense<0.000000e+00> : vector<1x8x8xf32>
    %14 = tpu.matmul %9, %11, %cst_5 {dimension_numbers = #tpu.dot_dimension_numbers<[2], [2], [1], [1], [0, 0, 0, 1, 1, 1], [0], [0]>} : vector<1x8x32xbf16>, vector<1x8x32xbf16>, vector<1x8x8xf32> -> vector<1x8x8xf32>
    "tpu.trace_stop"() : () -> ()
    %cst_6 = arith.constant dense<0xFF800000> : vector<1x8xf32>
    %15 = vector.multi_reduction <maximumf>, %14, %cst_6 [2] : vector<1x8x8xf32> to vector<1x8xf32>
    %16 = vector.shape_cast %15 : vector<1x8xf32> to vector<1x8x1xf32>
    %17 = vector.broadcast %16 : vector<1x8x1xf32> to vector<1x8x8xf32>
    %18 = arith.subf %14, %17 : vector<1x8x8xf32>
    %19 = math.exp %18 : vector<1x8x8xf32>
    %cst_7 = arith.constant dense<0.000000e+00> : vector<1x8xf32>
    %20 = vector.multi_reduction <add>, %19, %cst_7 [2] : vector<1x8x8xf32> to vector<1x8xf32>
    %21 = vector.shape_cast %20 : vector<1x8xf32> to vector<1x8x1xf32>
    %22 = tpu.reciprocal %21 {approx = true} : vector<1x8x1xf32> -> vector<1x8x1xf32>
    %23 = vector.broadcast %22 : vector<1x8x1xf32> to vector<1x8x8xf32>
    %24 = arith.mulf %19, %23 : vector<1x8x8xf32>
    %25 = arith.truncf %24 : vector<1x8x8xf32> to vector<1x8x8xbf16>
    "tpu.trace_start"() <{level = 10 : i32, message = "bqk,bke->bqe"}> : () -> ()
    %cst_8 = arith.constant dense<0.000000e+00> : vector<1x8x32xf32>
    %26 = tpu.matmul %25, %13, %cst_8 {dimension_numbers = #tpu.dot_dimension_numbers<[2], [1], [1], [2], [0, 0, 0, 1, 1, 2], [0], [0]>} : vector<1x8x8xbf16>, vector<1x8x32xbf16>, vector<1x8x32xf32> -> vector<1x8x32xf32>
    "tpu.trace_stop"() : () -> ()
    %c0_9 = arith.constant 0 : index
    %c0_10 = arith.constant 0 : index
    %27 = vector.load %arg9[%c0_9, %c0_10] : memref<8x32xf32, #tpu.memory_space<vmem>>, vector<8x32xf32>
    %28 = vector.shape_cast %26 : vector<1x8x32xf32> to vector<8x32xf32>
    %29 = arith.truncf %28 : vector<8x32xf32> to vector<8x32xbf16>
    %c0_11 = arith.constant 0 : index
    %c0_12 = arith.constant 0 : index
    %c0_13 = arith.constant 0 : index
    %30 = vector.load %arg4[%c0_11, %c0_12, %c0_13] : memref<1x32x32xbf16, #tpu.memory_space<vmem>>, vector<1x32x32xbf16>
    %31 = vector.shape_cast %30 : vector<1x32x32xbf16> to vector<32x32xbf16>
    %cst_14 = arith.constant dense<0.000000e+00> : vector<8x32xf32>
    %32 = tpu.matmul %29, %31, %cst_14 {dimension_numbers = #tpu.dot_dimension_numbers<[1], [0], [0], [1], [0, 0, 1, 1], [], []>} : vector<8x32xbf16>, vector<32x32xbf16>, vector<8x32xf32> -> vector<8x32xf32>
    %33 = arith.addf %27, %32 : vector<8x32xf32>
    %c0_15 = arith.constant 0 : index
    %c0_16 = arith.constant 0 : index
    %34 = vector.load %arg9[%c0_15, %c0_16] : memref<8x32xf32, #tpu.memory_space<vmem>>, vector<8x32xf32>
    tpu.vector_store %arg9[%c0_15, %c0_16], %33 {strides = array<i32>} : memref<8x32xf32, #tpu.memory_space<vmem>>, vector<8x32xf32>,
    %c3_i32 = arith.constant 3 : i32
    %35 = arith.cmpi eq, %arg1, %c3_i32 : i32
    %36 = arith.extui %35 : i1 to i32
    %c0_i32_17 = arith.constant 0 : i32
    %37 = arith.cmpi ne, %36, %c0_i32_17 : i32
    scf.if %37 {
      %c0_18 = arith.constant 0 : index
      %c0_19 = arith.constant 0 : index
      %38 = vector.load %arg9[%c0_18, %c0_19] : memref<8x32xf32, #tpu.memory_space<vmem>>, vector<8x32xf32>
      %c0_20 = arith.constant 0 : index
      %c0_21 = arith.constant 0 : index
      %39 = vector.load %arg5[%c0_20, %c0_21] : memref<1x32xf32, #tpu.memory_space<vmem>>, vector<1x32xf32>
      %40 = vector.shape_cast %39 : vector<1x32xf32> to vector<32xf32>
      %41 = vector.shape_cast %40 : vector<32xf32> to vector<1x32xf32>
      %42 = vector.broadcast %41 : vector<1x32xf32> to vector<8x32xf32>
      %43 = arith.addf %38, %42 : vector<8x32xf32>
      %c0_22 = arith.constant 0 : index
      %c0_23 = arith.constant 0 : index
      %c0_24 = arith.constant 0 : index
      %44 = vector.load %arg2[%c0_22, %c0_23, %c0_24] : memref<1x8x32xf32, #tpu.memory_space<vmem>>, vector<1x8x32xf32>
      %45 = vector.shape_cast %44 : vector<1x8x32xf32> to vector<8x32xf32>
      %46 = arith.addf %43, %45 : vector<8x32xf32>
      %cst_25 = arith.constant dense<0.000000e+00> : vector<8xf32>
      %47 = vector.multi_reduction <add>, %46, %cst_25 [1] : vector<8x32xf32> to vector<8xf32>
      %48 = vector.shape_cast %47 : vector<8xf32> to vector<8x1xf32>
      %cst_26 = arith.constant 3.200000e+01 : f32
      %49 = vector.broadcast %cst_26 : f32 to vector<8x1xf32>
      %50 = arith.divf %48, %49 : vector<8x1xf32>
      %51 = vector.broadcast %50 : vector<8x1xf32> to vector<8x32xf32>
      %52 = arith.subf %46, %51 : vector<8x32xf32>
      %53 = arith.mulf %52, %52 : vector<8x32xf32>
      %cst_27 = arith.constant dense<0.000000e+00> : vector<8xf32>
      %54 = vector.multi_reduction <add>, %53, %cst_27 [1] : vector<8x32xf32> to vector<8xf32>
      %55 = vector.shape_cast %54 : vector<8xf32> to vector<8x1xf32>
      %cst_28 = arith.constant 3.200000e+01 : f32
      %56 = vector.broadcast %cst_28 : f32 to vector<8x1xf32>
      %57 = arith.divf %55, %56 : vector<8x1xf32>
      %58 = vector.broadcast %50 : vector<8x1xf32> to vector<8x32xf32>
      %59 = arith.subf %46, %58 : vector<8x32xf32>
      %cst_29 = arith.constant 9.99999974E-6 : f32
      %60 = vector.broadcast %cst_29 : f32 to vector<8x1xf32>
      %61 = arith.addf %57, %60 : vector<8x1xf32>
      %62 = math.rsqrt %61 : vector<8x1xf32>
      %63 = vector.broadcast %62 : vector<8x1xf32> to vector<8x32xf32>
      %64 = arith.mulf %59, %63 : vector<8x32xf32>
      %c0_30 = arith.constant 0 : index
      %c0_31 = arith.constant 0 : index
      %65 = vector.load %arg6[%c0_30, %c0_31] : memref<1x32xf32, #tpu.memory_space<vmem>>, vector<1x32xf32>
      %66 = vector.shape_cast %65 : vector<1x32xf32> to vector<32xf32>
      %67 = vector.shape_cast %66 : vector<32xf32> to vector<1x32xf32>
      %68 = vector.broadcast %67 : vector<1x32xf32> to vector<8x32xf32>
      %69 = arith.mulf %64, %68 : vector<8x32xf32>
      %c0_32 = arith.constant 0 : index
      %c0_33 = arith.constant 0 : index
      %70 = vector.load %arg7[%c0_32, %c0_33] : memref<1x32xf32, #tpu.memory_space<vmem>>, vector<1x32xf32>
      %71 = vector.shape_cast %70 : vector<1x32xf32> to vector<32xf32>
      %72 = vector.shape_cast %71 : vector<32xf32> to vector<1x32xf32>
      %73 = vector.broadcast %72 : vector<1x32xf32> to vector<8x32xf32>
      %74 = arith.addf %69, %73 : vector<8x32xf32>
      %75 = vector.shape_cast %74 : vector<8x32xf32> to vector<1x8x32xf32>
      %c0_34 = arith.constant 0 : index
      %c0_35 = arith.constant 0 : index
      %c0_36 = arith.constant 0 : index
      %76 = vector.load %arg8[%c0_34, %c0_35, %c0_36] : memref<1x8x32xf32, #tpu.memory_space<vmem>>, vector<1x8x32xf32>
      tpu.vector_store %arg8[%c0_34, %c0_35, %c0_36], %75 {strides = array<i32>} : memref<1x8x32xf32, #tpu.memory_space<vmem>>, vector<1x8x32xf32>,
    } else {
    }
    return
  }
  func.func @transform_0(%arg0: i32, %arg1: i32) -> (i32, i32, i32) {
    %c0_i32 = arith.constant 0 : i32
    %c0_i32_0 = arith.constant 0 : i32
    %c0_i32_1 = arith.constant 0 : i32
    return %arg0, %c0_i32, %c0_i32_0 : i32, i32, i32
  }
  func.func @transform_1(%arg0: i32, %arg1: i32) -> (i32, i32, i32) {
    %c0_i32 = arith.constant 0 : i32
    %c0_i32_0 = arith.constant 0 : i32
    %c0_i32_1 = arith.constant 0 : i32
    return %arg1, %c0_i32, %c0_i32_0 : i32, i32, i32
  }
  func.func @transform_2(%arg0: i32, %arg1: i32) -> (i32, i32, i32) {
    %c0_i32 = arith.constant 0 : i32
    %c0_i32_0 = arith.constant 0 : i32
    %c0_i32_1 = arith.constant 0 : i32
    return %arg1, %c0_i32, %c0_i32_0 : i32, i32, i32
  }
  func.func @transform_3(%arg0: i32, %arg1: i32) -> (i32, i32) {
    %c0_i32 = arith.constant 0 : i32
    %c0_i32_0 = arith.constant 0 : i32
    %c0_i32_1 = arith.constant 0 : i32
    return %c0_i32, %c0_i32_0 : i32, i32
  }
  func.func @transform_4(%arg0: i32, %arg1: i32) -> (i32, i32) {
    %c0_i32 = arith.constant 0 : i32
    %c0_i32_0 = arith.constant 0 : i32
    %c0_i32_1 = arith.constant 0 : i32
    return %c0_i32, %c0_i32_0 : i32, i32
  }
  func.func @transform_5(%arg0: i32, %arg1: i32) -> (i32, i32) {
    %c0_i32 = arith.constant 0 : i32
    %c0_i32_0 = arith.constant 0 : i32
    %c0_i32_1 = arith.constant 0 : i32
    return %c0_i32, %c0_i32_0 : i32, i32
  }
  func.func @transform_6(%arg0: i32, %arg1: i32) -> (i32, i32, i32) {
    %c0_i32 = arith.constant 0 : i32
    %c0_i32_0 = arith.constant 0 : i32
    %c0_i32_1 = arith.constant 0 : i32
    return %arg0, %c0_i32, %c0_i32_0 : i32, i32, i32
  }
}

</mosaic_0001>

<llo_original>
// kernel: tpu_custom_call.1
$region0: #{tpu_custom_call.1}
  #allocation0 [shape = 'u32[]', space=smem, size = 0x4, offset = 0x4, fixed_abs, tag = 'smem constant byte address 0x4 - core index']
  #allocation1 [shape = 'u32[144,128]{1,0:T(1,128)}', space=vmem, size = 0x12000, scoped, tag = 'internal scratch']
  #allocation2 [shape = 'f32[8,32]{1,0:T(8,128)}', space=vmem, size = 0x1000, scoped, tag = 'scratch operand']
  #allocation3 [shape = 'bf16[8,32]{1,0:T(8,128)(2,1)}', space=vmem, size = 0x800, scoped, tag = 'scratch operand']
  %s0 = inlined_call_operand.hbm [shape: f32[2,8,32], index: 0, kind: input, shape index: {}]
  %s1 = inlined_call_operand.hbm [shape: bf16[4,32,96], index: 1, kind: input, shape index: {}]
  %s2 = inlined_call_operand.hbm [shape: bf16[4,32,32], index: 2, kind: input, shape index: {}]
  %s3 = inlined_call_operand.vmem [shape: f32[1,32], index: 3, kind: input, shape index: {}]
  %s4 = inlined_call_operand.vmem [shape: f32[1,32], index: 4, kind: input, shape index: {}]
  %s5 = inlined_call_operand.vmem [shape: f32[1,32], index: 5, kind: input, shape index: {}]
  %s6 = inlined_call_operand.hbm [shape: f32[2,8,32], index: 6, kind: output, shape index: {}]
  %s7 = sld [smem:[#allocation0]]
  $region77: #{tpu_custom_call.1} parent=0
    _
  %s9 = ssub.s32 1, %s7
  %s10 = scalar_select 0, %s9, %s7
  $region1: #{tpu_custom_call.1} parent=0
    #allocation4 [shape = 'u8[8192]{0}', space=vmem, size = 0x2000, scoped, tag = 'input window, operand 0']
    #allocation5 [shape = 's32[2]{0}', space=sflag, size = 0x8, scoped, tag = 'scoped memory for tpu_custom_call.1']
    #allocation6 [shape = 's32[2]{0}', space=sflag, size = 0x8, scoped, tag = 'scoped memory for tpu_custom_call.1']
    #allocation7 [shape = 'u8[16384]{0}', space=vmem, size = 0x4000, scoped, tag = 'input window, operand 1']
    #allocation8 [shape = 's32[2]{0}', space=sflag, size = 0x8, scoped, tag = 'scoped memory for tpu_custom_call.1']
    #allocation9 [shape = 'u8[16384]{0}', space=vmem, size = 0x4000, scoped, tag = 'input window, operand 2']
    #allocation10 [shape = 'u8[8192]{0}', space=vmem, size = 0x2000, scoped, tag = 'output window, operand 0']
    %11 = vsyncpa [#allocation5], 0
    %s12 = scalar_lea.sflag [#allocation5], 1
    %13 = vsyncpa %s12, 0
    %14 = vsyncpa [#allocation8], 0
    %s15 = scalar_lea.sflag [#allocation8], 1
    %16 = vsyncpa %s15, 0
    %17 = vsyncpa [#allocation6], 0
    %s18 = scalar_lea.sflag [#allocation6], 1
    %19 = vsyncpa %s18, 0
    loop: start=0, step=1, limit=10
    $region2: #{tpu_custom_call.1} parent=1 // loop_pre_header
      _
    $region3: #{tpu_custom_call.1} parent=1 // loop_header
      %s21 = sphi 0, %s25
      %p22 = scmp.ge.s32.totalorder %s21, 10
      %s28 = sphi 0, %s40
      %s29 = sphi 0, %s36
      %s30 = sphi 0, %s28
      %s31 = sphi 0, %s29
      %s32 = sphi 0, %s30
      %s33 = sphi 0, %s31
      %s43 = sphi 0, %s45
      %s46 = sphi 0, %s43
      %s47 = sphi 0, %s46
      %s63 = sphi 0, %s47
      %s69 = sphi 0, %s71
      %s72 = sphi 0, %s69
      %s73 = sphi 0, %s72
      %s89 = sphi 0, %s73
      %s95 = sphi 0, %s97
      %s98 = sphi 0, %s95
      %s99 = sphi 0, %s98
      %s115 = sphi 0, %s99
      %s119 = sphi 0, %s119
      %s121 = sphi 0, %s119
      %s122 = sphi 0, %s121
      %s136 = sphi 0, %s122
      %s140 = sphi 0, %s140
      %s142 = sphi 0, %s140
      %s143 = sphi 0, %s142
      %s157 = sphi 0, %s143
      %s161 = sphi 0, %s161
      %s163 = sphi 0, %s161
      %s164 = sphi 0, %s163
      %s178 = sphi 0, %s164
      %s184 = sphi 0, %s186
      %s187 = sphi 0, %s184
      %s188 = sphi 0, %s187
      %s204 = sphi 0, %s188
    $region4: #{tpu_custom_call.1} parent=1 // loop_header_branch
      %24 = sbr.rel (%p22) target = $region8
    $region5: #{tpu_custom_call.1} parent=1 // loop_body
      %s26 = ssub.s32 %s21, 1
      %s27 = ssub.s32 %s21, 2
      %s34 = sadd.s32 1, %s29
      %p35 = scmp.ge.s32.totalorder %s34, 4
      %s36 = scalar_select %p35, 0, %s34
      %s37 = sadd.s32 1, %s28
      %s38 = scalar_select %p35, %s37, %s28
      %p39 = scmp.ge.s32.totalorder %s38, 2
      %s40 = scalar_select %p39, 0, %s38
      %s41 = ssub.s32 %s28, %s40
      %p42 = scmp.eq.s32.totalorder %s41, 0
      %s44 = sadd.s32 %s43, 1
      %s45 = scalar_select %p42, %s43, %s44
      %p48 = pneg %p42
      %p49 = scmp.eq.s32.totalorder %s21, 7
      %p50 = por %p48, %p49
      %p51 = scmp.ne.s32.totalorder %s43, %s46
      %p52 = scmp.eq.s32.totalorder %s21, 0
      %p53 = por %p51, %p52
      %p54 = scmp.ne.s32.totalorder %s43, %s46
      %p55 = scmp.eq.s32.totalorder %s26, 7
      %p56 = por %p54, %p55
      %p57 = scmp.ne.s32.totalorder %s46, %s47
      %p58 = scmp.eq.s32.totalorder %s26, 0
      %p59 = por %p57, %p58
      %p60 = scmp.ne.s32.totalorder %s46, %s47
      %p61 = scmp.eq.s32.totalorder %s27, 7
      %p62 = por %p60, %p61
      %p64 = scmp.ne.s32.totalorder %s47, %s63
      %p65 = scmp.eq.s32.totalorder %s27, 0
      %p66 = por %p64, %p65
      %s67 = ssub.s32 %s29, %s36
      %p68 = scmp.eq.s32.totalorder %s67, 0
      %s70 = sadd.s32 %s69, 1
      %s71 = scalar_select %p68, %s69, %s70
      %p74 = pneg %p68
      %p75 = scmp.eq.s32.totalorder %s21, 7
      %p76 = por %p74, %p75
      %p77 = scmp.ne.s32.totalorder %s69, %s72
      %p78 = scmp.eq.s32.totalorder %s21, 0
      %p79 = por %p77, %p78
      %p80 = scmp.ne.s32.totalorder %s69, %s72
      %p81 = scmp.eq.s32.totalorder %s26, 7
      %p82 = por %p80, %p81
      %p83 = scmp.ne.s32.totalorder %s72, %s73
      %p84 = scmp.eq.s32.totalorder %s26, 0
      %p85 = por %p83, %p84
      %p86 = scmp.ne.s32.totalorder %s72, %s73
      %p87 = scmp.eq.s32.totalorder %s27, 7
      %p88 = por %p86, %p87
      %p90 = scmp.ne.s32.totalorder %s73, %s89
      %p91 = scmp.eq.s32.totalorder %s27, 0
      %p92 = por %p90, %p91
      %s93 = ssub.s32 %s29, %s36
      %p94 = scmp.eq.s32.totalorder %s93, 0
      %s96 = sadd.s32 %s95, 1
      %s97 = scalar_select %p94, %s95, %s96
      %p100 = pneg %p94
      %p101 = scmp.eq.s32.totalorder %s21, 7
      %p102 = por %p100, %p101
      %p103 = scmp.ne.s32.totalorder %s95, %s98
      %p104 = scmp.eq.s32.totalorder %s21, 0
      %p105 = por %p103, %p104
      %p106 = scmp.ne.s32.totalorder %s95, %s98
      %p107 = scmp.eq.s32.totalorder %s26, 7
      %p108 = por %p106, %p107
      %p109 = scmp.ne.s32.totalorder %s98, %s99
      %p110 = scmp.eq.s32.totalorder %s26, 0
      %p111 = por %p109, %p110
      %p112 = scmp.ne.s32.totalorder %s98, %s99
      %p113 = scmp.eq.s32.totalorder %s27, 7
      %p114 = por %p112, %p113
      %p116 = scmp.ne.s32.totalorder %s99, %s115
      %p117 = scmp.eq.s32.totalorder %s27, 0
      %p118 = por %p116, %p117
      %s120 = sadd.s32 %s119, 1
      %p123 = scmp.eq.s32.totalorder %s21, 7
      %p124 = scmp.ne.s32.totalorder %s119, %s121
      %p125 = scmp.eq.s32.totalorder %s21, 0
      %p126 = por %p124, %p125
      %p127 = scmp.ne.s32.totalorder %s119, %s121
      %p128 = scmp.eq.s32.totalorder %s26, 7
      %p129 = por %p127, %p128
      %p130 = scmp.ne.s32.totalorder %s121, %s122
      %p131 = scmp.eq.s32.totalorder %s26, 0
      %p132 = por %p130, %p131
      %p133 = scmp.ne.s32.totalorder %s121, %s122
      %p134 = scmp.eq.s32.totalorder %s27, 7
      %p135 = por %p133, %p134
      %p137 = scmp.ne.s32.totalorder %s122, %s136
      %p138 = scmp.eq.s32.totalorder %s27, 0
      %p139 = por %p137, %p138
      %s141 = sadd.s32 %s140, 1
      %p144 = scmp.eq.s32.totalorder %s21, 7
      %p145 = scmp.ne.s32.totalorder %s140, %s142
      %p146 = scmp.eq.s32.totalorder %s21, 0
      %p147 = por %p145, %p146
      %p148 = scmp.ne.s32.totalorder %s140, %s142
      %p149 = scmp.eq.s32.totalorder %s26, 7
      %p150 = por %p148, %p149
      %p151 = scmp.ne.s32.totalorder %s142, %s143
      %p152 = scmp.eq.s32.totalorder %s26, 0
      %p153 = por %p151, %p152
      %p154 = scmp.ne.s32.totalorder %s142, %s143
      %p155 = scmp.eq.s32.totalorder %s27, 7
      %p156 = por %p154, %p155
      %p158 = scmp.ne.s32.totalorder %s143, %s157
      %p159 = scmp.eq.s32.totalorder %s27, 0
      %p160 = por %p158, %p159
      %s162 = sadd.s32 %s161, 1
      %p165 = scmp.eq.s32.totalorder %s21, 7
      %p166 = scmp.ne.s32.totalorder %s161, %s163
      %p167 = scmp.eq.s32.totalorder %s21, 0
      %p168 = por %p166, %p167
      %p169 = scmp.ne.s32.totalorder %s161, %s163
      %p170 = scmp.eq.s32.totalorder %s26, 7
      %p171 = por %p169, %p170
      %p172 = scmp.ne.s32.totalorder %s163, %s164
      %p173 = scmp.eq.s32.totalorder %s26, 0
      %p174 = por %p172, %p173
      %p175 = scmp.ne.s32.totalorder %s163, %s164
      %p176 = scmp.eq.s32.totalorder %s27, 7
      %p177 = por %p175, %p176
      %p179 = scmp.ne.s32.totalorder %s164, %s178
      %p180 = scmp.eq.s32.totalorder %s27, 0
      %p181 = por %p179, %p180
      %s182 = ssub.s32 %s28, %s40
      %p183 = scmp.eq.s32.totalorder %s182, 0
      %s185 = sadd.s32 %s184, 1
      %s186 = scalar_select %p183, %s184, %s185
      %p189 = pneg %p183
      %p190 = scmp.eq.s32.totalorder %s21, 7
      %p191 = por %p189, %p190
      %p192 = scmp.ne.s32.totalorder %s184, %s187
      %p193 = scmp.eq.s32.totalorder %s21, 0
      %p194 = por %p192, %p193
      %p195 = scmp.ne.s32.totalorder %s184, %s187
      %p196 = scmp.eq.s32.totalorder %s26, 7
      %p197 = por %p195, %p196
      %p198 = scmp.ne.s32.totalorder %s187, %s188
      %p199 = scmp.eq.s32.totalorder %s26, 0
      %p200 = por %p198, %p199
      %p201 = scmp.ne.s32.totalorder %s187, %s188
      %p202 = scmp.eq.s32.totalorder %s27, 7
      %p203 = por %p201, %p202
      %p205 = scmp.ne.s32.totalorder %s188, %s204
      %p206 = scmp.eq.s32.totalorder %s27, 0
      %p207 = por %p205, %p206
      %p208 = scmp.le.s32.totalorder 1, %s21
      %p209 = scmp.lt.s32.totalorder %s21, 9
      %p210 = pnand %p208, %p209
      %p211 = pneg %p210
      // Predicated region
      $region9: #{tpu_custom_call.1} parent=5 // pred_check
        _
      $region10: #{tpu_custom_call.1} parent=5 // pred_check_branch
        %213 = sbr.rel (%p210) target = $region12
      $region11: #{tpu_custom_call.1} parent=5 // pred_region
        %s214 = ssub.s32 %s21, 1
        // Predicated region
        $region13: #{tpu_custom_call.1} parent=11 // pred_check
          %p215 = pneg %p132
        $region14: #{tpu_custom_call.1} parent=11 // pred_check_branch
          %217 = sbr.rel (%p215) target = $region16
        $region15: #{tpu_custom_call.1} parent=11 // pred_region
          _
        $region16: #{tpu_custom_call.1} parent=11 // pred_fallthru
          _
        // Predicated region
        $region17: #{tpu_custom_call.1} parent=11 // pred_check
          %p218 = pneg %p153
        $region18: #{tpu_custom_call.1} parent=11 // pred_check_branch
          %220 = sbr.rel (%p218) target = $region20
        $region19: #{tpu_custom_call.1} parent=11 // pred_region
          _
        $region20: #{tpu_custom_call.1} parent=11 // pred_fallthru
          _
        // Predicated region
        $region21: #{tpu_custom_call.1} parent=11 // pred_check
          %p221 = pneg %p174
        $region22: #{tpu_custom_call.1} parent=11 // pred_check_branch
          %223 = sbr.rel (%p221) target = $region24
        $region23: #{tpu_custom_call.1} parent=11 // pred_region
          _
        $region24: #{tpu_custom_call.1} parent=11 // pred_fallthru
          _
      $region12: #{tpu_custom_call.1} parent=5 // pred_fallthru
        _
      %p224 = scmp.lt.s32.totalorder %s21, 8
      // Predicated region
      $region25: #{tpu_custom_call.1} parent=5 // pred_check
        %p225 = pneg %p224
      $region26: #{tpu_custom_call.1} parent=5 // pred_check_branch
        %227 = sbr.rel (%p225) target = $region28
      $region27: #{tpu_custom_call.1} parent=5 // pred_region
        // Predicated region
        $region29: #{tpu_custom_call.1} parent=27 // pred_check
          %p228 = pneg %p53
        $region30: #{tpu_custom_call.1} parent=27 // pred_check_branch
          %230 = sbr.rel (%p228) target = $region32
        $region31: #{tpu_custom_call.1} parent=27 // pred_region
          %s231 = sand.u32 %s43, 1
          %s232 = scalar_lea.sflag [#allocation5], %s231
          %s233 = sand.u32 %s43, 1
          %s234 = smul.addr %s233, 8
          %s235 = scalar_lea.vmem [#allocation4], %s234
          %s237 = ssub.s32 128, 128
          %238 = vsyncadd %s232, %s237
          %s239 = smul.addr %s28, 128
          %s240 = scalar_lea.hbm %s0, %s239
          %s242 = sshll.u32 %s235, 4
          %s243 = int_to_ptr.vmem [resolvable:$true] %s242
          %245 = dma.hbm_to_vmem [thread:$0]  %s240, 128, %s243, %s232
        $region32: #{tpu_custom_call.1} parent=27 // pred_fallthru
          _
        // Predicated region
        $region33: #{tpu_custom_call.1} parent=27 // pred_check
          %p246 = pneg %p79
        $region34: #{tpu_custom_call.1} parent=27 // pred_check_branch
          %248 = sbr.rel (%p246) target = $region36
        $region35: #{tpu_custom_call.1} parent=27 // pred_region
          %s249 = sand.u32 %s21, 1
          %s250 = scalar_lea.sflag [#allocation8], %s249
          %s251 = sand.u32 %s69, 1
          %s252 = smul.addr %s251, 16
          %s253 = scalar_lea.vmem [#allocation7], %s252
          %s255 = ssub.s32 256, 256
          %256 = vsyncadd %s250, %s255
          %s257 = smul.addr %s29, 4
          %s258 = smul.addr %s257, 64
          %s259 = scalar_lea.hbm %s1, %s258
          %s260 = sshll.u32 %s253, 4
          %s261 = int_to_ptr.vmem [resolvable:$true] %s260
          %266 = dma.hbm_to_vmem [thread:$0]  %s259, 256, %s261, %s250, 64, 64, 4
        $region36: #{tpu_custom_call.1} parent=27 // pred_fallthru
          _
        // Predicated region
        $region37: #{tpu_custom_call.1} parent=27 // pred_check
          %p267 = pneg %p105
        $region38: #{tpu_custom_call.1} parent=27 // pred_check_branch
          %269 = sbr.rel (%p267) target = $region40
        $region39: #{tpu_custom_call.1} parent=27 // pred_region
          %s270 = sand.u32 %s21, 1
          %s271 = scalar_lea.sflag [#allocation8], %s270
          %s272 = sand.u32 %s95, 1
          %s273 = smul.addr %s272, 16
          %s274 = scalar_lea.vmem [#allocation9], %s273
          %s276 = ssub.s32 256, 256
          %277 = vsyncadd %s271, %s276
          %s278 = smul.addr %s29, 4
          %s279 = smul.addr %s278, 64
          %s280 = scalar_lea.hbm %s2, %s279
          %s281 = sshll.u32 %s274, 4
          %s282 = int_to_ptr.vmem [resolvable:$true] %s281
          %287 = dma.hbm_to_vmem [thread:$0]  %s280, 256, %s282, %s271, 64, 64, 4
        $region40: #{tpu_custom_call.1} parent=27 // pred_fallthru
          _
      $region28: #{tpu_custom_call.1} parent=5 // pred_fallthru
        _
      %p288 = scmp.le.s32.totalorder 1, %s21
      %p289 = scmp.lt.s32.totalorder %s21, 9
      %p290 = pnand %p288, %p289
      %p291 = pneg %p290
      // Predicated region
      $region41: #{tpu_custom_call.1} parent=5 // pred_check
        _
      $region42: #{tpu_custom_call.1} parent=5 // pred_check_branch
        %293 = sbr.rel (%p290) target = $region44
      $region43: #{tpu_custom_call.1} parent=5 // pred_region
        %s294 = ssub.s32 %s21, 1
        %s295 = sand.u32 %s46, 1
        %s296 = scalar_lea.sflag [#allocation5], %s295
        %s297 = sand.u32 %s46, 1
        %s298 = smul.addr %s297, 8
        %s299 = scalar_lea.vmem [#allocation4], %s298
        // Predicated region
        $region45: #{tpu_custom_call.1} parent=43 // pred_check
          %p300 = pneg %p59
        $region46: #{tpu_custom_call.1} parent=43 // pred_check_branch
          %302 = sbr.rel (%p300) target = $region48
        $region47: #{tpu_custom_call.1} parent=43 // pred_region
          %303 = dma.done %s296, 128
        $region48: #{tpu_custom_call.1} parent=43 // pred_fallthru
          _
        %s304 = sand.u32 %s26, 1
        %s305 = scalar_lea.sflag [#allocation8], %s304
        %s306 = sand.u32 %s72, 1
        %s307 = smul.addr %s306, 16
        %s308 = scalar_lea.vmem [#allocation7], %s307
        // Predicated region
        $region49: #{tpu_custom_call.1} parent=43 // pred_check
          %p309 = pneg %p85
        $region50: #{tpu_custom_call.1} parent=43 // pred_check_branch
          %311 = sbr.rel (%p309) target = $region52
        $region51: #{tpu_custom_call.1} parent=43 // pred_region
          %312 = dma.done %s305, 256
        $region52: #{tpu_custom_call.1} parent=43 // pred_fallthru
          _
        %s313 = sand.u32 %s26, 1
        %s314 = scalar_lea.sflag [#allocation8], %s313
        %s315 = sand.u32 %s98, 1
        %s316 = smul.addr %s315, 16
        %s317 = scalar_lea.vmem [#allocation9], %s316
        // Predicated region
        $region53: #{tpu_custom_call.1} parent=43 // pred_check
          %p318 = pneg %p111
        $region54: #{tpu_custom_call.1} parent=43 // pred_check_branch
          %320 = sbr.rel (%p318) target = $region56
        $region55: #{tpu_custom_call.1} parent=43 // pred_region
          %321 = dma.done %s314, 256
        $region56: #{tpu_custom_call.1} parent=43 // pred_fallthru
          _
        %s322 = sand.u32 %s46, 1
        %s323 = scalar_lea.sflag [#allocation5], %s322
        %s324 = sand.u32 %s46, 1
        %s325 = smul.addr %s324, 8
        %s326 = scalar_lea.vmem [#allocation4], %s325
        %p327 = pneg %p59
        %p328 = pneg %p56
        %s329 = sand.u32 %s26, 1
        %s330 = scalar_lea.sflag [#allocation8], %s329
        %s331 = sand.u32 %s72, 1
        %s332 = smul.addr %s331, 16
        %s333 = scalar_lea.vmem [#allocation7], %s332
        %p334 = pneg %p85
        %p335 = pneg %p82
        %s336 = sand.u32 %s26, 1
        %s337 = scalar_lea.sflag [#allocation8], %s336
        %s338 = sand.u32 %s98, 1
        %s339 = smul.addr %s338, 16
        %s340 = scalar_lea.vmem [#allocation9], %s339
        %p341 = pneg %p111
        %p342 = pneg %p108
        %p343 = pneg %p132
        %p344 = pneg %p129
        %p345 = pneg %p153
        %p346 = pneg %p150
        %p347 = pneg %p174
        %p348 = pneg %p171
        %p349 = pneg %p200
        %p350 = pneg %p197
        %s351 = sand.u32 %s187, 1
        %s352 = scalar_lea.sflag [#allocation6], %s351
        %s353 = sand.u32 %s187, 1
        %s354 = smul.addr %s353, 8
        %s355 = scalar_lea.vmem [#allocation10], %s354
        %p357 = scmp.eq.s32.totalorder %s31, 0
        // Predicated region
        $region57: #{tpu_custom_call.1} parent=43 // pred_check
          %p358 = pneg %p357
        $region58: #{tpu_custom_call.1} parent=43 // pred_check_branch
          %360 = sbr.rel (%p358) target = $region60
        $region59: #{tpu_custom_call.1} parent=43 // pred_region
          %vm361 = vcmask 261120
          %362 = vst.msk [vmem:[#allocation2] sm:$0xff] %vm361, 0.0
          %v363 = vld [vmem:[%s299] sm:$0xff]
          %v364 = vpack.c.bf16 %v363, %v363
          %vm365 = vcmask 257024
          %366 = vst.msk [vmem:[#allocation3] sm:$0xf] %vm365, %v364
        $region60: #{tpu_custom_call.1} parent=43 // pred_fallthru
          _
        %v367 = vld [vmem:[#allocation3] sm:$0xf]
        %v368 = vld [vmem:[%s308] sm:$0xf]
        %v369 = vld [vmem:[%s308 + $0x4] sm:$0xf]
        %v370 = vld [vmem:[%s308 + $0x8] sm:$0xf]
        %v371 = vld [vmem:[%s308 + $0xc] sm:$0xf]
        %v376 = vunpack.c.l.b16 %v368
        %v377 = vunpack.c.l.b16 %v369
        %v378 = vunpack.c.l.b16 %v370
        %v379 = vunpack.c.l.b16 %v371
        %v380 = vpack.c.b16 %v377, %v376
        %v381 = vpack.c.b16 %v379, %v378
        %vm384 = vcmask 261120
        %v386 = vsel %vm384, %v367, 0
        %388 = vmatprep.subr.bf16.mxu0 0
        %389 = vmatpush1.bf16.msra.mxu0 %v380
        %390 = vmatprep.subr.bf16.mxu0 0
        %391 = vmatpush1.bf16.msra.mxu0 %v381
        %392 = vmatprep.subr.bf16.mxu0 0
        %393 = vmatpush1.bf16.msra.mxu0 0
        %394 = vmatprep.subr.bf16.mxu0 0
        %395 = vmatpush1.bf16.msra.mxu0 0
        %396 = vmatprep.subr.bf16.mxu0 0
        %397 = vmatpush1.bf16.msra.mxu0 0
        %398 = vmatprep.subr.bf16.mxu0 0
        %399 = vmatpush1.bf16.msra.mxu0 0
        %400 = vmatprep.subr.bf16.mxu0 0
        %401 = vmatpush1.bf16.msra.mxu0 0
        %402 = vmatprep.subr.bf16.mxu0 0
        %403 = vmatpush1.bf16.msra.mxu0 0
        %404 = vmatprep.subr.bf16.mxu0 0
        %405 = vmatpush1.bf16.msra.mxu0 0
        %406 = vmatprep.subr.bf16.mxu0 0
        %407 = vmatpush1.bf16.msra.mxu0 0
        %408 = vmatprep.subr.bf16.mxu0 0
        %409 = vmatpush1.bf16.msra.mxu0 0
        %410 = vmatprep.subr.bf16.mxu0 0
        %411 = vmatpush1.bf16.msra.mxu0 0
        %412 = vmatprep.subr.bf16.mxu0 0
        %413 = vmatpush1.bf16.msra.mxu0 0
        %414 = vmatprep.subr.bf16.mxu0 0
        %415 = vmatpush1.bf16.msra.mxu0 0
        %416 = vmatprep.subr.bf16.mxu0 0
        %417 = vmatpush1.bf16.msra.mxu0 0
        %418 = vmatprep.subr.bf16.mxu0 0
        %419 = vmatpush1.bf16.msra.mxu0 0
        %420 = vmatprep.mubr.bf16.mxu0 0
        %421 = vmatmul.mubr.bf16.gmra.mrb[0].mxu0 %v386
        %v422 = vpop.f32.mrb[0].mxu0
        %v423 = vadd.f32 0.0, %v422
        %v424 = vpop.f32.mrb[0].mxu0
        %v425 = vpop.f32.mrb[0].mxu0
        %v426 = vpop.f32.mrb[0].mxu0
        %427 = vdwg.mxu0
        %v428 = vpack.c.bf16 %v423, %v423
        %430 = vrot.lane.b32.xlu0 %v428, 96
        %v431 = vpop.permute.xlu0 %430
        %v433 = vsel %vm384, %v428, 0
        %v436 = vsel %vm384, %v431, 0
        %438 = vmatprep.subr.bf16.mxu0 0
        %439 = vmatpush1.bf16.xpose.msra.mxu0 %v436
        %440 = vmatprep.subr.bf16.mxu0 0
        %441 = vmatpush1.bf16.xpose.msra.mxu0 0
        %442 = vmatprep.subr.bf16.mxu0 0
        %443 = vmatpush1.bf16.xpose.msra.mxu0 0
        %444 = vmatprep.subr.bf16.mxu0 0
        %445 = vmatpush1.bf16.xpose.msra.mxu0 0
        %446 = vmatprep.subr.bf16.mxu0 0
        %447 = vmatpush1.bf16.xpose.msra.mxu0 0
        %448 = vmatprep.subr.bf16.mxu0 0
        %449 = vmatpush1.bf16.xpose.msra.mxu0 0
        %450 = vmatprep.subr.bf16.mxu0 0
        %451 = vmatpush1.bf16.xpose.msra.mxu0 0
        %452 = vmatprep.subr.bf16.mxu0 0
        %453 = vmatpush1.bf16.xpose.msra.mxu0 0
        %454 = vmatprep.subr.bf16.mxu0 0
        %455 = vmatpush1.bf16.xpose.msra.mxu0 0
        %456 = vmatprep.subr.bf16.mxu0 0
        %457 = vmatpush1.bf16.xpose.msra.mxu0 0
        %458 = vmatprep.subr.bf16.mxu0 0
        %459 = vmatpush1.bf16.xpose.msra.mxu0 0
        %460 = vmatprep.subr.bf16.mxu0 0
        %461 = vmatpush1.bf16.xpose.msra.mxu0 0
        %462 = vmatprep.subr.bf16.mxu0 0
        %463 = vmatpush1.bf16.xpose.msra.mxu0 0
        %464 = vmatprep.subr.bf16.mxu0 0
        %465 = vmatpush1.bf16.xpose.msra.mxu0 0
        %466 = vmatprep.subr.bf16.mxu0 0
        %467 = vmatpush1.bf16.xpose.msra.mxu0 0
        %468 = vmatprep.subr.bf16.mxu0 0
        %469 = vmatpush1.bf16.xpose.msra.mxu0 0
        %470 = vmatprep.mubr.bf16.mxu0 0
        %471 = vmatmul.mubr.bf16.gmra.mrb[0].mxu0 %v433
        %v472 = vpop.f32.mrb[0].mxu0
        %v473 = vadd.f32 0.0, %v472
        %v474 = vpop.f32.mrb[0].mxu0
        %v475 = vpop.f32.mrb[0].mxu0
        %v476 = vpop.f32.mrb[0].mxu0
        %477 = vdwg.mxu0
        %vm478 = vcmask 64512
        %v479 = vsel %vm478, %v473, -inf
        %480 = vmax.xlane.f32.xlu0 %v479
        %v481 = vpop.xlane.xlu0 %480
        %v482 = vsub.f32 %v473, %v481
        %v483 = vmul.f32 %v482, 1.442695
        %v484 = vpow.pop %v483
        %v485 = vsel %vm478, %v484, 0.0
        %486 = vadd.xlane.f32.xlu0 %v485
        %v487 = vpop.xlane.xlu0 %486
        %v488 = vrcp.pop %v487
        %v489 = vmul.f32 %v484, %v488
        %v490 = vpack.c.bf16 %v489, %v489
        %491 = vrot.lane.b32.xlu0 %v428, 64
        %v492 = vpop.permute.xlu0 %491
        %v494 = vsel %vm478, %v490, 0
        %vm496 = vcmask 1043456
        %v498 = vsel %vm496, %v492, 0
        %500 = vmatprep.subr.bf16.mxu0 0
        %501 = vmatpush1.bf16.msra.mxu0 %v498
        %502 = vmatprep.subr.bf16.mxu0 0
        %503 = vmatpush1.bf16.msra.mxu0 0
        %504 = vmatprep.subr.bf16.mxu0 0
        %505 = vmatpush1.bf16.msra.mxu0 0
        %506 = vmatprep.subr.bf16.mxu0 0
        %507 = vmatpush1.bf16.msra.mxu0 0
        %508 = vmatprep.subr.bf16.mxu0 0
        %509 = vmatpush1.bf16.msra.mxu0 0
        %510 = vmatprep.subr.bf16.mxu0 0
        %511 = vmatpush1.bf16.msra.mxu0 0
        %512 = vmatprep.subr.bf16.mxu0 0
        %513 = vmatpush1.bf16.msra.mxu0 0
        %514 = vmatprep.subr.bf16.mxu0 0
        %515 = vmatpush1.bf16.msra.mxu0 0
        %516 = vmatprep.subr.bf16.mxu0 0
        %517 = vmatpush1.bf16.msra.mxu0 0
        %518 = vmatprep.subr.bf16.mxu0 0
        %519 = vmatpush1.bf16.msra.mxu0 0
        %520 = vmatprep.subr.bf16.mxu0 0
        %521 = vmatpush1.bf16.msra.mxu0 0
        %522 = vmatprep.subr.bf16.mxu0 0
        %523 = vmatpush1.bf16.msra.mxu0 0
        %524 = vmatprep.subr.bf16.mxu0 0
        %525 = vmatpush1.bf16.msra.mxu0 0
        %526 = vmatprep.subr.bf16.mxu0 0
        %527 = vmatpush1.bf16.msra.mxu0 0
        %528 = vmatprep.subr.bf16.mxu0 0
        %529 = vmatpush1.bf16.msra.mxu0 0
        %530 = vmatprep.subr.bf16.mxu0 0
        %531 = vmatpush1.bf16.msra.mxu0 0
        %532 = vmatprep.mubr.bf16.mxu0 0
        %533 = vmatmul.mubr.bf16.gmra.mrb[0].mxu0 %v494
        %v534 = vpop.f32.mrb[0].mxu0
        %v535 = vadd.f32 0.0, %v534
        %v536 = vpop.f32.mrb[0].mxu0
        %v537 = vpop.f32.mrb[0].mxu0
        %v538 = vpop.f32.mrb[0].mxu0
        %539 = vdwg.mxu0
        %v540 = vld [vmem:[#allocation2] sm:$0xff]
        %v541 = vpack.c.bf16 %v535, %v535
        %v542 = vld [vmem:[%s317] sm:$0xf]
        %v543 = vld [vmem:[%s317 + $0x4] sm:$0xf]
        %v544 = vld [vmem:[%s317 + $0x8] sm:$0xf]
        %v545 = vld [vmem:[%s317 + $0xc] sm:$0xf]
        %v550 = vunpack.c.l.b16 %v542
        %v551 = vunpack.c.l.b16 %v543
        %v552 = vunpack.c.l.b16 %v544
        %v553 = vunpack.c.l.b16 %v545
        %v554 = vpack.c.b16 %v551, %v550
        %v555 = vpack.c.b16 %v553, %v552
        %v559 = vsel %vm384, %v541, 0
        %561 = vmatprep.subr.bf16.mxu0 0
        %562 = vmatpush1.bf16.msra.mxu0 %v554
        %563 = vmatprep.subr.bf16.mxu0 0
        %564 = vmatpush1.bf16.msra.mxu0 %v555
        %565 = vmatprep.subr.bf16.mxu0 0
        %566 = vmatpush1.bf16.msra.mxu0 0
        %567 = vmatprep.subr.bf16.mxu0 0
        %568 = vmatpush1.bf16.msra.mxu0 0
        %569 = vmatprep.subr.bf16.mxu0 0
        %570 = vmatpush1.bf16.msra.mxu0 0
        %571 = vmatprep.subr.bf16.mxu0 0
        %572 = vmatpush1.bf16.msra.mxu0 0
        %573 = vmatprep.subr.bf16.mxu0 0
        %574 = vmatpush1.bf16.msra.mxu0 0
        %575 = vmatprep.subr.bf16.mxu0 0
        %576 = vmatpush1.bf16.msra.mxu0 0
        %577 = vmatprep.subr.bf16.mxu0 0
        %578 = vmatpush1.bf16.msra.mxu0 0
        %579 = vmatprep.subr.bf16.mxu0 0
        %580 = vmatpush1.bf16.msra.mxu0 0
        %581 = vmatprep.subr.bf16.mxu0 0
        %582 = vmatpush1.bf16.msra.mxu0 0
        %583 = vmatprep.subr.bf16.mxu0 0
        %584 = vmatpush1.bf16.msra.mxu0 0
        %585 = vmatprep.subr.bf16.mxu0 0
        %586 = vmatpush1.bf16.msra.mxu0 0
        %587 = vmatprep.subr.bf16.mxu0 0
        %588 = vmatpush1.bf16.msra.mxu0 0
        %589 = vmatprep.subr.bf16.mxu0 0
        %590 = vmatpush1.bf16.msra.mxu0 0
        %591 = vmatprep.subr.bf16.mxu0 0
        %592 = vmatpush1.bf16.msra.mxu0 0
        %593 = vmatprep.mubr.bf16.mxu0 0
        %594 = vmatmul.mubr.bf16.gmra.mrb[0].mxu0 %v559
        %v595 = vpop.f32.mrb[0].mxu0
        %v596 = vadd.f32 0.0, %v595
        %v597 = vpop.f32.mrb[0].mxu0
        %v598 = vpop.f32.mrb[0].mxu0
        %v599 = vpop.f32.mrb[0].mxu0
        %600 = vdwg.mxu0
        %v601 = vadd.f32 %v540, %v596
        %602 = vst.msk [vmem:[#allocation2] sm:$0xff] %vm384, %v601
        %p603 = scmp.eq.s32.totalorder %s31, 3
        // Predicated region
        $region61: #{tpu_custom_call.1} parent=43 // pred_check
          %p604 = pneg %p603
        $region62: #{tpu_custom_call.1} parent=43 // pred_check_branch
          %606 = sbr.rel (%p604) target = $region64
        $region63: #{tpu_custom_call.1} parent=43 // pred_region
          %v607 = vld [vmem:[#allocation2] sm:$0xff]
          %v608 = vld [vmem:[%s3] sm:$0x1]
          %v610 = vlaneseq
          %v611 = vshrl.u32 %v610, 7
          %v612 = vsub.s32 0, %v611
          %v613 = vrot.slane %v608, %v612
          %v615 = vadd.f32 %v607, %v613
          %v616 = vld [vmem:[%s299] sm:$0xff]
          %v617 = vadd.f32 %v615, %v616
          %v618 = vsel %vm384, %v617, 0.0
          %619 = vadd.xlane.f32.xlu0 %v618
          %v620 = vpop.xlane.xlu0 %619
          %v621 = vrcp.pop 32.0
          %v622 = vmul.f32 %v620, %v621
          %v623 = vsub.f32 %v617, %v622
          %v624 = vmul.f32 %v623, %v623
          %v625 = vsel %vm384, %v624, 0.0
          %626 = vadd.xlane.f32.xlu0 %v625
          %v627 = vpop.xlane.xlu0 %626
          %v628 = vmul.f32 %v627, %v621
          %v629 = vadd.f32 %v628, 1e-05
          %v630 = vrsqrt.pop %v629
          %v631 = vmul.f32 %v623, %v630
          %v632 = vld [vmem:[%s4] sm:$0x1]
          %v634 = vlaneseq
          %v635 = vshrl.u32 %v634, 7
          %v636 = vsub.s32 0, %v635
          %v637 = vrot.slane %v632, %v636
          %v639 = vmul.f32 %v631, %v637
          %v640 = vld [vmem:[%s5] sm:$0x1]
          %v642 = vlaneseq
          %v643 = vshrl.u32 %v642, 7
          %v644 = vsub.s32 0, %v643
          %v645 = vrot.slane %v640, %v644
          %v647 = vadd.f32 %v639, %v645
          %648 = vst.msk [vmem:[%s355] sm:$0xff] %vm384, %v647
        $region64: #{tpu_custom_call.1} parent=43 // pred_fallthru
          _
        %s649 = sand.u32 %s187, 1
        %s650 = scalar_lea.sflag [#allocation6], %s649
        %s651 = sand.u32 %s187, 1
        %s652 = smul.addr %s651, 8
        %s653 = scalar_lea.vmem [#allocation10], %s652
        // Predicated region
        $region65: #{tpu_custom_call.1} parent=43 // pred_check
          %p654 = pneg %p197
        $region66: #{tpu_custom_call.1} parent=43 // pred_check_branch
          %656 = sbr.rel (%p654) target = $region68
        $region67: #{tpu_custom_call.1} parent=43 // pred_region
          %s658 = ssub.s32 128, 128
          %659 = vsyncadd %s650, %s658
          %s660 = smul.addr %s30, 128
          %s661 = scalar_lea.hbm %s6, %s660
          %s663 = sshll.u32 %s653, 4
          %s664 = int_to_ptr.vmem [resolvable:$true] %s663
          %666 = dma.vmem_to_hbm [thread:$0]  %s664, 128, %s661, %s650
        $region68: #{tpu_custom_call.1} parent=43 // pred_fallthru
          _
      $region44: #{tpu_custom_call.1} parent=5 // pred_fallthru
        _
      %p667 = scmp.le.s32.totalorder 2, %s21
      // Predicated region
      $region69: #{tpu_custom_call.1} parent=5 // pred_check
        %p668 = pneg %p667
      $region70: #{tpu_custom_call.1} parent=5 // pred_check_branch
        %670 = sbr.rel (%p668) target = $region72
      $region71: #{tpu_custom_call.1} parent=5 // pred_region
        %s671 = ssub.s32 %s21, 2
        // Predicated region
        $region73: #{tpu_custom_call.1} parent=71 // pred_check
          %p672 = pneg %p203
        $region74: #{tpu_custom_call.1} parent=71 // pred_check_branch
          %674 = sbr.rel (%p672) target = $region76
        $region75: #{tpu_custom_call.1} parent=71 // pred_region
          %s675 = sand.u32 %s188, 1
          %s676 = scalar_lea.sflag [#allocation6], %s675
          %s677 = sand.u32 %s188, 1
          %s678 = smul.addr %s677, 8
          %s679 = scalar_lea.vmem [#allocation10], %s678
          %680 = dma.done %s676, 128
        $region76: #{tpu_custom_call.1} parent=71 // pred_fallthru
          _
      $region72: #{tpu_custom_call.1} parent=5 // pred_fallthru
        _
    $region6: #{tpu_custom_call.1} parent=1 // loop_footer
      %s25 = sadd.s32 1, %s21
    $region7: #{tpu_custom_call.1} parent=1 // loop_footer_branch
      %20 = sbr.rel target = $region3
    $region8: #{tpu_custom_call.1} parent=1 // loop_exit
      _
    %681 = vsyncpa [#allocation5], 1
    %s682 = scalar_lea.sflag [#allocation5], 1
    %683 = vsyncpa %s682, 1
    %684 = vsyncpa [#allocation8], 1
    %s685 = scalar_lea.sflag [#allocation8], 1
    %686 = vsyncpa %s685, 1
    %687 = vsyncpa [#allocation6], 1
    %s688 = scalar_lea.sflag [#allocation6], 1
    %689 = vsyncpa %s688, 1

</llo_original>
